<compile_context>
chip_gen: v5e
topology: v5e:2x2
jax: 0.10.0
libtpu: 0.0.40
codegen_flags: <defaults>
</compile_context>

<pallas_src>
import functools

import jax
import jax.numpy as jnp
from jax.experimental import pallas as pl
from jax.experimental.pallas import tpu as pltpu


def _conv3x3_bn_relu_kernel(x_ref, w_ref, mask_ref, shift_ref, o_ref, *, W):
    """One output-channel tile over the whole (batch-folded) feature map.

    x_ref:     (C_in, N)        input, N = B*H*W (batch folded into lanes)
    w_ref:     (TCO, 9*C_in)    BN-scale-folded conv weights, tap-major columns
    mask_ref:  (6, N)           rows 0..2: row-validity for dh=-1,0,1
                                rows 3..5: col-validity for dw=-1,0,1
    shift_ref: (TCO, 1)         folded (conv_bias - mean)*scale + beta
    o_ref:     (TCO, N)
    """
    x = x_ref[...]                      # (C_in, N)
    m = mask_ref[...]                   # (6, N)

    # Build the 9 shifted+masked taps and stack them along the contraction axis.
    taps = []
    for dh in (-1, 0, 1):
        rmask = None if dh == 0 else m[dh + 1:dh + 2]        # (1, N)
        for dw in (-1, 0, 1):
            cmask = None if dw == 0 else m[dw + 4:dw + 5]    # (1, N)
            off = dh * W + dw
            t = x if off == 0 else jnp.roll(x, -off, axis=1)
            if rmask is not None:
                t = t * rmask
            if cmask is not None:
                t = t * cmask
            taps.append(t)
    stacked = jnp.concatenate(taps, axis=0)                  # (9*C_in, N)

    # Single MXU matmul with K = 9*C_in.
    acc = jnp.dot(w_ref[...], stacked, preferred_element_type=jnp.float32)

    # Fused conv-bias + BatchNorm(inference) shift + ReLU epilogue.
    y = acc + shift_ref[...]
    o_ref[...] = jnp.maximum(y, 0.0).astype(o_ref.dtype)


def double_conv1_forward(x, conv_w, conv_b, bn_gamma, bn_beta, bn_mean, bn_var,
                         eps=1e-5, co_tile=None, compute_dtype=None):
    """x: (B, C_in, H, W); conv_w: (C_out, C_in, 3, 3); conv_b / BN params: (C_out,).
    Returns (B, C_out, H, W).  BN is applied in inference mode."""
    B, C_in, H, W = x.shape
    C_out = conv_w.shape[0]
    HW = H * W
    N = B * HW
    if co_tile is None:
        co_tile = C_out if C_out <= 256 else 256
    assert C_out % co_tile == 0

    # Fold batch into the lane axis: (B, C_in, H, W) -> (C_in, B*H*W).
    x_flat = jnp.transpose(x, (1, 0, 2, 3)).reshape(C_in, N)

    # Fold BN scale into the conv weights; keep only an additive shift.
    inv_std = jax.lax.rsqrt(bn_var + eps)
    scale = bn_gamma * inv_std                                # (C_out,)
    w_scaled = conv_w * scale[:, None, None, None]            # (C_out, C_in, 3, 3)
    # -> (C_out, 9*C_in), column block k = (dh+1)*3+(dw+1) holds w[:, :, dh+1, dw+1]
    w_flat = jnp.transpose(w_scaled, (0, 2, 3, 1)).reshape(C_out, 9 * C_in)
    shift = ((conv_b - bn_mean) * scale + bn_beta).reshape(C_out, 1)

    # Compact padding-validity mask bank: 3 row masks + 3 col masks (outer
    # products give the 9 per-tap masks; also covers cross-image roll wrap).
    pos = jnp.arange(N, dtype=jnp.int32)
    q = pos % HW
    r = q // W
    c = q % W
    row_masks = jnp.stack([((r + dh) >= 0) & ((r + dh) < H) for dh in (-1, 0, 1)])
    col_masks = jnp.stack([((c + dw) >= 0) & ((c + dw) < W) for dw in (-1, 0, 1)])
    masks = jnp.concatenate([row_masks, col_masks], axis=0)   # (6, N) bool

    io_dtype = x.dtype
    cdt = io_dtype if compute_dtype is None else compute_dtype
    x_flat = x_flat.astype(cdt)
    w_flat = w_flat.astype(cdt)
    masks = masks.astype(cdt)
    shift = shift.astype(jnp.float32)

    kernel = functools.partial(_conv3x3_bn_relu_kernel, W=W)

    flops = 2 * C_out * 9 * C_in * N + 2 * C_out * N
    bytes_accessed = (x_flat.size * x_flat.dtype.itemsize
                      + w_flat.size * w_flat.dtype.itemsize
                      + masks.size * masks.dtype.itemsize
                      + 4 * C_out
                      + C_out * N * jnp.dtype(io_dtype).itemsize)

    out = pl.pallas_call(
        kernel,
        out_shape=jax.ShapeDtypeStruct((C_out, N), io_dtype),
        grid_spec=pltpu.PrefetchScalarGridSpec(
            num_scalar_prefetch=0,
            grid=(C_out // co_tile,),
            in_specs=[
                pl.BlockSpec((C_in, N), lambda co: (0, 0)),            # x (resident)
                pl.BlockSpec((co_tile, 9 * C_in), lambda co: (co, 0)),  # weights
                pl.BlockSpec((6, N), lambda co: (0, 0)),               # mask bank
                pl.BlockSpec((co_tile, 1), lambda co: (co, 0)),        # shift
            ],
            out_specs=pl.BlockSpec((co_tile, N), lambda co: (co, 0)),
        ),
        compiler_params=pltpu.CompilerParams(
            dimension_semantics=("parallel",)),
        cost_estimate=pl.CostEstimate(flops=flops, transcendentals=0,
                                      bytes_accessed=int(bytes_accessed)),
    )(x_flat, w_flat, masks, shift)

    # (C_out, B*H*W) -> (B, C_out, H, W)
    return jnp.transpose(out.reshape(C_out, B, H, W), (1, 0, 2, 3))


def double_conv1_reference(x, conv_w, conv_b, bn_gamma, bn_beta, bn_mean, bn_var,
                           eps=1e-5):
    """Pure-JAX reference matching the PyTorch forward (BN in eval mode)."""
    y = jax.lax.conv_general_dilated(
        x, conv_w, window_strides=(1, 1), padding=((1, 1), (1, 1)),
        dimension_numbers=("NCHW", "OIHW", "NCHW"),
        precision=jax.lax.Precision.HIGHEST)
    y = y + conv_b[None, :, None, None]
    inv_std = jax.lax.rsqrt(bn_var + eps)
    y = ((y - bn_mean[None, :, None, None])
         * (bn_gamma * inv_std)[None, :, None, None]
         + bn_beta[None, :, None, None])
    return jnp.maximum(y, 0.0)


if __name__ == "__main__":
    B, C_in, C_out, H, W = 2, 4, 8, 16, 16

    key = jax.random.PRNGKey(0)
    kx, kw, kb, kg, kbe, km, kv = jax.random.split(key, 7)

    x = jax.random.normal(kx, (B, C_in, H, W), dtype=jnp.float32)
    conv_w = 0.1 * jax.random.normal(kw, (C_out, C_in, 3, 3), dtype=jnp.float32)
    conv_b = 0.1 * jax.random.normal(kb, (C_out,), dtype=jnp.float32)
    bn_gamma = 1.0 + 0.1 * jax.random.normal(kg, (C_out,), dtype=jnp.float32)
    bn_beta = 0.1 * jax.random.normal(kbe, (C_out,), dtype=jnp.float32)
    bn_mean = 0.1 * jax.random.normal(km, (C_out,), dtype=jnp.float32)
    bn_var = 0.5 + jnp.abs(jax.random.normal(kv, (C_out,), dtype=jnp.float32))

    out = double_conv1_forward(x, conv_w, conv_b, bn_gamma, bn_beta, bn_mean, bn_var)
    out = jax.block_until_ready(out)

    ref = double_conv1_reference(x, conv_w, conv_b, bn_gamma, bn_beta, bn_mean, bn_var)
    assert out.shape == (B, C_out, H, W)
    # Tolerance widened vs 1e-3: the kernel matmul uses default MXU precision
    # while the reference uses Precision.HIGHEST.
    assert jnp.allclose(out, ref, atol=1e-2, rtol=1e-2), "mismatch vs reference"

    print("KERNEL_OK")
</pallas_src>

<mosaic_0001>
module attributes {stable_mosaic.version = 11 : i64} {
  func.func @_conv3x3_bn_relu_kernel(%arg0: i32, %arg1: memref<4x512xf32, #tpu.memory_space<vmem>>, %arg2: memref<8x36xf32, #tpu.memory_space<vmem>>, %arg3: memref<6x512xf32, #tpu.memory_space<vmem>>, %arg4: memref<8x1xf32, #tpu.memory_space<vmem>>, %arg5: memref<8x512xf32, #tpu.memory_space<vmem>>) attributes {dimension_semantics = [#tpu.dimension_semantics<parallel>], iteration_bounds = array<i64: 1>, scalar_prefetch = 0 : i64, scratch_operands = 0 : i64, tpu.core_type = #tpu.core_type<tc>, window_params = [{pipeline_mode = #tpu.pipeline_mode<synchronous>, transform_indices = @transform_0, window_bounds = array<i64: 4, 512>}, {transform_indices = @transform_1, window_bounds = array<i64: 8, 36>}, {pipeline_mode = #tpu.pipeline_mode<synchronous>, transform_indices = @transform_2, window_bounds = array<i64: 6, 512>}, {transform_indices = @transform_3, window_bounds = array<i64: 8, 1>}, {transform_indices = @transform_4, window_bounds = array<i64: 8, 512>}]} {
    %c0 = arith.constant 0 : index
    %c0_0 = arith.constant 0 : index
    %0 = vector.load %arg1[%c0, %c0_0] : memref<4x512xf32, #tpu.memory_space<vmem>>, vector<4x512xf32>
    %c0_1 = arith.constant 0 : index
    %c0_2 = arith.constant 0 : index
    %1 = vector.load %arg3[%c0_1, %c0_2] : memref<6x512xf32, #tpu.memory_space<vmem>>, vector<6x512xf32>
    %2 = vector.extract_strided_slice %1 {offsets = [0, 0], sizes = [1, 512], strides = [1, 1]} : vector<6x512xf32> to vector<1x512xf32>
    %3 = vector.extract_strided_slice %1 {offsets = [3, 0], sizes = [1, 512], strides = [1, 1]} : vector<6x512xf32> to vector<1x512xf32>
    %4 = vector.extract_strided_slice %0 {offsets = [0, 495], sizes = [4, 17], strides = [1, 1]} : vector<4x512xf32> to vector<4x17xf32>
    %5 = vector.extract_strided_slice %0 {offsets = [0, 0], sizes = [4, 495], strides = [1, 1]} : vector<4x512xf32> to vector<4x495xf32>
    %6 = tpu.concatenate %4, %5 in 1 : vector<4x17xf32>, vector<4x495xf32> -> vector<4x512xf32>
    %7 = vector.broadcast %2 : vector<1x512xf32> to vector<4x512xf32>
    %8 = arith.mulf %6, %7 : vector<4x512xf32>
    %9 = vector.broadcast %3 : vector<1x512xf32> to vector<4x512xf32>
    %10 = arith.mulf %8, %9 : vector<4x512xf32>
    %11 = vector.extract_strided_slice %0 {offsets = [0, 496], sizes = [4, 16], strides = [1, 1]} : vector<4x512xf32> to vector<4x16xf32>
    %12 = vector.extract_strided_slice %0 {offsets = [0, 0], sizes = [4, 496], strides = [1, 1]} : vector<4x512xf32> to vector<4x496xf32>
    %13 = tpu.concatenate %11, %12 in 1 : vector<4x16xf32>, vector<4x496xf32> -> vector<4x512xf32>
    %14 = vector.broadcast %2 : vector<1x512xf32> to vector<4x512xf32>
    %15 = arith.mulf %13, %14 : vector<4x512xf32>
    %16 = vector.extract_strided_slice %1 {offsets = [5, 0], sizes = [1, 512], strides = [1, 1]} : vector<6x512xf32> to vector<1x512xf32>
    %17 = vector.extract_strided_slice %0 {offsets = [0, 497], sizes = [4, 15], strides = [1, 1]} : vector<4x512xf32> to vector<4x15xf32>
    %18 = vector.extract_strided_slice %0 {offsets = [0, 0], sizes = [4, 497], strides = [1, 1]} : vector<4x512xf32> to vector<4x497xf32>
    %19 = tpu.concatenate %17, %18 in 1 : vector<4x15xf32>, vector<4x497xf32> -> vector<4x512xf32>
    %20 = vector.broadcast %2 : vector<1x512xf32> to vector<4x512xf32>
    %21 = arith.mulf %19, %20 : vector<4x512xf32>
    %22 = vector.broadcast %16 : vector<1x512xf32> to vector<4x512xf32>
    %23 = arith.mulf %21, %22 : vector<4x512xf32>
    %24 = vector.extract_strided_slice %1 {offsets = [3, 0], sizes = [1, 512], strides = [1, 1]} : vector<6x512xf32> to vector<1x512xf32>
    %25 = vector.extract_strided_slice %0 {offsets = [0, 511], sizes = [4, 1], strides = [1, 1]} : vector<4x512xf32> to vector<4x1xf32>
    %26 = vector.extract_strided_slice %0 {offsets = [0, 0], sizes = [4, 511], strides = [1, 1]} : vector<4x512xf32> to vector<4x511xf32>
    %27 = tpu.concatenate %25, %26 in 1 : vector<4x1xf32>, vector<4x511xf32> -> vector<4x512xf32>
    %28 = vector.broadcast %24 : vector<1x512xf32> to vector<4x512xf32>
    %29 = arith.mulf %27, %28 : vector<4x512xf32>
    %30 = vector.extract_strided_slice %1 {offsets = [5, 0], sizes = [1, 512], strides = [1, 1]} : vector<6x512xf32> to vector<1x512xf32>
    %31 = vector.extract_strided_slice %0 {offsets = [0, 1], sizes = [4, 511], strides = [1, 1]} : vector<4x512xf32> to vector<4x511xf32>
    %32 = vector.extract_strided_slice %0 {offsets = [0, 0], sizes = [4, 1], strides = [1, 1]} : vector<4x512xf32> to vector<4x1xf32>
    %33 = tpu.concatenate %31, %32 in 1 : vector<4x511xf32>, vector<4x1xf32> -> vector<4x512xf32>
    %34 = vector.broadcast %30 : vector<1x512xf32> to vector<4x512xf32>
    %35 = arith.mulf %33, %34 : vector<4x512xf32>
    %36 = vector.extract_strided_slice %1 {offsets = [2, 0], sizes = [1, 512], strides = [1, 1]} : vector<6x512xf32> to vector<1x512xf32>
    %37 = vector.extract_strided_slice %1 {offsets = [3, 0], sizes = [1, 512], strides = [1, 1]} : vector<6x512xf32> to vector<1x512xf32>
    %38 = vector.extract_strided_slice %0 {offsets = [0, 15], sizes = [4, 497], strides = [1, 1]} : vector<4x512xf32> to vector<4x497xf32>
    %39 = vector.extract_strided_slice %0 {offsets = [0, 0], sizes = [4, 15], strides = [1, 1]} : vector<4x512xf32> to vector<4x15xf32>
    %40 = tpu.concatenate %38, %39 in 1 : vector<4x497xf32>, vector<4x15xf32> -> vector<4x512xf32>
    %41 = vector.broadcast %36 : vector<1x512xf32> to vector<4x512xf32>
    %42 = arith.mulf %40, %41 : vector<4x512xf32>
    %43 = vector.broadcast %37 : vector<1x512xf32> to vector<4x512xf32>
    %44 = arith.mulf %42, %43 : vector<4x512xf32>
    %45 = vector.extract_strided_slice %0 {offsets = [0, 16], sizes = [4, 496], strides = [1, 1]} : vector<4x512xf32> to vector<4x496xf32>
    %46 = vector.extract_strided_slice %0 {offsets = [0, 0], sizes = [4, 16], strides = [1, 1]} : vector<4x512xf32> to vector<4x16xf32>
    %47 = tpu.concatenate %45, %46 in 1 : vector<4x496xf32>, vector<4x16xf32> -> vector<4x512xf32>
    %48 = vector.broadcast %36 : vector<1x512xf32> to vector<4x512xf32>
    %49 = arith.mulf %47, %48 : vector<4x512xf32>
    %50 = vector.extract_strided_slice %1 {offsets = [5, 0], sizes = [1, 512], strides = [1, 1]} : vector<6x512xf32> to vector<1x512xf32>
    %51 = vector.extract_strided_slice %0 {offsets = [0, 17], sizes = [4, 495], strides = [1, 1]} : vector<4x512xf32> to vector<4x495xf32>
    %52 = vector.extract_strided_slice %0 {offsets = [0, 0], sizes = [4, 17], strides = [1, 1]} : vector<4x512xf32> to vector<4x17xf32>
    %53 = tpu.concatenate %51, %52 in 1 : vector<4x495xf32>, vector<4x17xf32> -> vector<4x512xf32>
    %54 = vector.broadcast %36 : vector<1x512xf32> to vector<4x512xf32>
    %55 = arith.mulf %53, %54 : vector<4x512xf32>
    %56 = vector.broadcast %50 : vector<1x512xf32> to vector<4x512xf32>
    %57 = arith.mulf %55, %56 : vector<4x512xf32>
    %58 = tpu.concatenate %10, %15, %23, %29, %0, %35, %44, %49, %57 in 0 : vector<4x512xf32>, vector<4x512xf32>, vector<4x512xf32>, vector<4x512xf32>, vector<4x512xf32>, vector<4x512xf32>, vector<4x512xf32>, vector<4x512xf32>, vector<4x512xf32> -> vector<36x512xf32>
    %c0_3 = arith.constant 0 : index
    %c0_4 = arith.constant 0 : index
    %59 = vector.load %arg2[%c0_3, %c0_4] : memref<8x36xf32, #tpu.memory_space<vmem>>, vector<8x36xf32>
    %cst = arith.constant dense<0.000000e+00> : vector<8x512xf32>
    %60 = tpu.matmul %59, %58, %cst {dimension_numbers = #tpu.dot_dimension_numbers<[1], [0], [0], [1], [0, 0, 1, 1], [], []>} : vector<8x36xf32>, vector<36x512xf32>, vector<8x512xf32> -> vector<8x512xf32>
    %c0_5 = arith.constant 0 : index
    %c0_6 = arith.constant 0 : index
    %61 = vector.load %arg4[%c0_5, %c0_6] : memref<8x1xf32, #tpu.memory_space<vmem>>, vector<8x1xf32>
    %62 = vector.broadcast %61 : vector<8x1xf32> to vector<8x512xf32>
    %63 = arith.addf %60, %62 : vector<8x512xf32>
    %cst_7 = arith.constant 0.000000e+00 : f32
    %64 = vector.broadcast %cst_7 : f32 to vector<8x512xf32>
    %65 = arith.maximumf %63, %64 : vector<8x512xf32>
    %c0_8 = arith.constant 0 : index
    %c0_9 = arith.constant 0 : index
    %66 = vector.load %arg5[%c0_8, %c0_9] : memref<8x512xf32, #tpu.memory_space<vmem>>, vector<8x512xf32>
    tpu.vector_store %arg5[%c0_8, %c0_9], %65 {strides = array<i32>} : memref<8x512xf32, #tpu.memory_space<vmem>>, vector<8x512xf32>,
    return
  }
  func.func @transform_0(%arg0: i32) -> (i32, i32) {
    %c0_i32 = arith.constant 0 : i32
    %c0_i32_0 = arith.constant 0 : i32
    %c0_i32_1 = arith.constant 0 : i32
    return %c0_i32, %c0_i32_0 : i32, i32
  }
  func.func @transform_1(%arg0: i32) -> (i32, i32) {
    %c0_i32 = arith.constant 0 : i32
    %c0_i32_0 = arith.constant 0 : i32
    return %arg0, %c0_i32 : i32, i32
  }
  func.func @transform_2(%arg0: i32) -> (i32, i32) {
    %c0_i32 = arith.constant 0 : i32
    %c0_i32_0 = arith.constant 0 : i32
    %c0_i32_1 = arith.constant 0 : i32
    return %c0_i32, %c0_i32_0 : i32, i32
  }
  func.func @transform_3(%arg0: i32) -> (i32, i32) {
    %c0_i32 = arith.constant 0 : i32
    %c0_i32_0 = arith.constant 0 : i32
    return %arg0, %c0_i32 : i32, i32
  }
  func.func @transform_4(%arg0: i32) -> (i32, i32) {
    %c0_i32 = arith.constant 0 : i32
    %c0_i32_0 = arith.constant 0 : i32
    return %arg0, %c0_i32 : i32, i32
  }
}

</mosaic_0001>

<llo_original>
// kernel: tpu_custom_call.1
$region0: #{tpu_custom_call.1}
  #allocation0 [shape = 'u32[]', space=smem, size = 0x4, offset = 0x4, fixed_abs, tag = 'smem constant byte address 0x4 - core index']
  #allocation1 [shape = 'u32[72,128]{1,0:T(1,128)}', space=vmem, size = 0x9000, scoped, tag = 'internal scratch']
  %s0 = inlined_call_operand.hbm [shape: f32[4,512], index: 0, kind: input, shape index: {}]
  %s1 = inlined_call_operand.vmem [shape: f32[8,36], index: 1, kind: input, shape index: {}]
  %s2 = inlined_call_operand.hbm [shape: f32[6,512], index: 2, kind: input, shape index: {}]
  %s3 = inlined_call_operand.vmem [shape: f32[8,1], index: 3, kind: input, shape index: {}]
  %s4 = inlined_call_operand.hbm [shape: f32[8,512], index: 4, kind: output, shape index: {}]
  %s5 = sld [smem:[#allocation0]]
  $region34: #{tpu_custom_call.1} parent=0
    _
  %s7 = ssub.s32 1, %s5
  %s8 = scalar_select 0, %s7, %s5
  $region1: #{tpu_custom_call.1} parent=0
    #allocation2 [shape = 'u8[8192]{0}', space=vmem, size = 0x2000, scoped, tag = 'input window, operand 0, single buffered']
    #allocation3 [shape = 's32[1]{0}', space=sflag, size = 0x4, scoped, tag = 'scoped memory for tpu_custom_call.1']
    #allocation4 [shape = 's32[1]{0}', space=sflag, size = 0x4, scoped, tag = 'scoped memory for tpu_custom_call.1']
    #allocation5 [shape = 'u8[16384]{0}', space=vmem, size = 0x4000, scoped, tag = 'input window, operand 2, single buffered']
    #allocation6 [shape = 's32[1]{0}', space=sflag, size = 0x4, scoped, tag = 'scoped memory for tpu_custom_call.1']
    #allocation7 [shape = 'u8[16384]{0}', space=vmem, size = 0x4000, scoped, tag = 'output window, operand 0, single buffered']
    %9 = vsyncpa [#allocation3], 0
    %10 = vsyncpa [#allocation6], 0
    %11 = vsyncpa [#allocation4], 0
    // Predicated region
    $region2: #{tpu_custom_call.1} parent=1 // pred_check
      _
    $region3: #{tpu_custom_call.1} parent=1 // pred_check_branch
      %13 = sbr.rel (0) target = $region5
    $region4: #{tpu_custom_call.1} parent=1 // pred_region
      %15 = vsyncadd [#allocation3], 0
      %s17 = sshll.u32 %s0, 4
      %s18 = int_to_ptr.hbm [resolvable:$true] %s17
      %s19 = sshll.u32 [#allocation2], 4
      %s20 = int_to_ptr.vmem [resolvable:$true] %s19
      %22 = dma.hbm_to_vmem [thread:$0]  %s18, 256, %s20, [#allocation3]
    $region5: #{tpu_custom_call.1} parent=1 // pred_fallthru
      _
    // Predicated region
    $region6: #{tpu_custom_call.1} parent=1 // pred_check
      _
    $region7: #{tpu_custom_call.1} parent=1 // pred_check_branch
      %24 = sbr.rel (0) target = $region9
    $region8: #{tpu_custom_call.1} parent=1 // pred_region
      _
    $region9: #{tpu_custom_call.1} parent=1 // pred_fallthru
      _
    // Predicated region
    $region10: #{tpu_custom_call.1} parent=1 // pred_check
      _
    $region11: #{tpu_custom_call.1} parent=1 // pred_check_branch
      %26 = sbr.rel (0) target = $region13
    $region12: #{tpu_custom_call.1} parent=1 // pred_region
      %28 = vsyncadd [#allocation6], 0
      %s30 = sshll.u32 %s2, 4
      %s31 = int_to_ptr.hbm [resolvable:$true] %s30
      %s32 = sshll.u32 [#allocation5], 4
      %s33 = int_to_ptr.vmem [resolvable:$true] %s32
      %35 = dma.hbm_to_vmem [thread:$0]  %s31, 512, %s33, [#allocation6]
    $region13: #{tpu_custom_call.1} parent=1 // pred_fallthru
      _
    // Predicated region
    $region14: #{tpu_custom_call.1} parent=1 // pred_check
      _
    $region15: #{tpu_custom_call.1} parent=1 // pred_check_branch
      %37 = sbr.rel (0) target = $region17
    $region16: #{tpu_custom_call.1} parent=1 // pred_region
      _
    $region17: #{tpu_custom_call.1} parent=1 // pred_fallthru
      _
    // Predicated region
    $region18: #{tpu_custom_call.1} parent=1 // pred_check
      _
    $region19: #{tpu_custom_call.1} parent=1 // pred_check_branch
      %39 = sbr.rel (0) target = $region21
    $region20: #{tpu_custom_call.1} parent=1 // pred_region
      %41 = dma.done [#allocation3], 256
    $region21: #{tpu_custom_call.1} parent=1 // pred_fallthru
      _
    // Predicated region
    $region22: #{tpu_custom_call.1} parent=1 // pred_check
      _
    $region23: #{tpu_custom_call.1} parent=1 // pred_check_branch
      %43 = sbr.rel (0) target = $region25
    $region24: #{tpu_custom_call.1} parent=1 // pred_region
      %45 = dma.done [#allocation6], 512
    $region25: #{tpu_custom_call.1} parent=1 // pred_fallthru
      _
    %v46 = vld [vmem:[#allocation2] sm:$0xff]
    %v47 = vld [vmem:[#allocation2 + $0x8] sm:$0xff]
    %v48 = vld [vmem:[#allocation5] sm:$0x3f]
    %v49 = vld [vmem:[#allocation5 + $0x8] sm:$0x3f]
    %v50 = vld [vmem:[#allocation5 + $0x10] sm:$0x3f]
    %v51 = vld [vmem:[#allocation5 + $0x18] sm:$0x3f]
    %53 = vst [vmem:[#allocation1] ss:$2 sm:$0xff] %v47
    %v54 = vld.sshfl [vmem:[#allocation1 + $0x8] sm:$0xff pattern:$0x75316420]
    %55 = vrot.lane.b32.xlu0 %v54, 17
    %v56 = vpop.permute.xlu0 %55
    %59 = vst [vmem:[#allocation1] ss:$2 sm:$0xff] %v46
    %s60 = scalar_lea.vmem [#allocation1], 16
    %61 = vst [vmem:[%s60] ss:$2 sm:$0xff] %v47
    %v62 = vld.sshfl [vmem:[#allocation1] sm:$0xff pattern:$0x75316420]
    %v63 = vld.sshfl [vmem:[#allocation1 + $0x8] sm:$0xff pattern:$0x75316420]
    %v64 = vld.sshfl [vmem:[#allocation1 + $0x10] sm:$0xff pattern:$0x75316420]
    %v65 = vld.sshfl [vmem:[#allocation1 + $0x18] sm:$0xff pattern:$0x75316420]
    %66 = vrot.lane.b32.xlu0 %v62, 17
    %v67 = vpop.permute.xlu0 %66
    %68 = vrot.lane.b32.xlu0 %v63, 17
    %v69 = vpop.permute.xlu0 %68
    %70 = vrot.lane.b32.xlu0 %v64, 17
    %v71 = vpop.permute.xlu0 %70
    %72 = vrot.lane.b32.xlu0 %v65, 17
    %v73 = vpop.permute.xlu0 %72
    %vm74 = vcmask 138240
    %v75 = vsel %vm74, %v67, %v69
    %v76 = vsel %vm74, %v69, %v71
    %v77 = vsel %vm74, %v71, %v73
    %v82 = vsel %vm74, %v56, %v67
    %v83 = vperm.slane %v48, 0
    %v84 = vperm.slane %v49, 0
    %v85 = vperm.slane %v50, 0
    %v86 = vperm.slane %v51, 0
    %v87 = vmul.f32 %v82, %v83
    %v88 = vmul.f32 %v75, %v84
    %v89 = vmul.f32 %v76, %v85
    %v90 = vmul.f32 %v77, %v86
    %v91 = vperm.slane %v48, 3
    %v92 = vperm.slane %v49, 3
    %v93 = vperm.slane %v50, 3
    %v94 = vperm.slane %v51, 3
    %v95 = vmul.f32 %v87, %v91
    %v96 = vmul.f32 %v88, %v92
    %v97 = vmul.f32 %v89, %v93
    %v98 = vmul.f32 %v90, %v94
    %99 = vst [vmem:[#allocation1] ss:$2 sm:$0xff] %v47
    %v100 = vld.sshfl [vmem:[#allocation1 + $0x8] sm:$0xff pattern:$0x75316420]
    %101 = vrot.lane.b32.xlu0 %v100, 16
    %v102 = vpop.permute.xlu0 %101
    %104 = vst [vmem:[#allocation1] ss:$2 sm:$0xff] %v46
    %s105 = scalar_lea.vmem [#allocation1], 16
    %106 = vst [vmem:[%s105] ss:$2 sm:$0xff] %v47
    %v107 = vld.sshfl [vmem:[#allocation1] sm:$0xff pattern:$0x75316420]
    %v108 = vld.sshfl [vmem:[#allocation1 + $0x8] sm:$0xff pattern:$0x75316420]
    %v109 = vld.sshfl [vmem:[#allocation1 + $0x10] sm:$0xff pattern:$0x75316420]
    %v110 = vld.sshfl [vmem:[#allocation1 + $0x18] sm:$0xff pattern:$0x75316420]
    %111 = vrot.lane.b32.xlu0 %v107, 16
    %v112 = vpop.permute.xlu0 %111
    %113 = vrot.lane.b32.xlu0 %v108, 16
    %v114 = vpop.permute.xlu0 %113
    %115 = vrot.lane.b32.xlu0 %v109, 16
    %v116 = vpop.permute.xlu0 %115
    %117 = vrot.lane.b32.xlu0 %v110, 16
    %v118 = vpop.permute.xlu0 %117
    %vm119 = vcmask 130048
    %v120 = vsel %vm119, %v112, %v114
    %v121 = vsel %vm119, %v114, %v116
    %v122 = vsel %vm119, %v116, %v118
    %v127 = vsel %vm119, %v102, %v112
    %v128 = vmul.f32 %v127, %v83
    %v129 = vmul.f32 %v120, %v84
    %v130 = vmul.f32 %v121, %v85
    %v131 = vmul.f32 %v122, %v86
    %132 = vst [vmem:[#allocation1] ss:$2 sm:$0xff] %v47
    %v133 = vld.sshfl [vmem:[#allocation1 + $0x8] sm:$0xff pattern:$0x75316420]
    %134 = vrot.lane.b32.xlu0 %v133, 15
    %v135 = vpop.permute.xlu0 %134
    %137 = vst [vmem:[#allocation1] ss:$2 sm:$0xff] %v46
    %s138 = scalar_lea.vmem [#allocation1], 16
    %139 = vst [vmem:[%s138] ss:$2 sm:$0xff] %v47
    %v140 = vld.sshfl [vmem:[#allocation1] sm:$0xff pattern:$0x75316420]
    %v141 = vld.sshfl [vmem:[#allocation1 + $0x8] sm:$0xff pattern:$0x75316420]
    %v142 = vld.sshfl [vmem:[#allocation1 + $0x10] sm:$0xff pattern:$0x75316420]
    %v143 = vld.sshfl [vmem:[#allocation1 + $0x18] sm:$0xff pattern:$0x75316420]
    %144 = vrot.lane.b32.xlu0 %v140, 15
    %v145 = vpop.permute.xlu0 %144
    %146 = vrot.lane.b32.xlu0 %v141, 15
    %v147 = vpop.permute.xlu0 %146
    %148 = vrot.lane.b32.xlu0 %v142, 15
    %v149 = vpop.permute.xlu0 %148
    %150 = vrot.lane.b32.xlu0 %v143, 15
    %v151 = vpop.permute.xlu0 %150
    %vm152 = vcmask 121856
    %v153 = vsel %vm152, %v145, %v147
    %v154 = vsel %vm152, %v147, %v149
    %v155 = vsel %vm152, %v149, %v151
    %v160 = vsel %vm152, %v135, %v145
    %v161 = vmul.f32 %v160, %v83
    %v162 = vmul.f32 %v153, %v84
    %v163 = vmul.f32 %v154, %v85
    %v164 = vmul.f32 %v155, %v86
    %v165 = vperm.slane %v48, 5
    %v166 = vperm.slane %v49, 5
    %v167 = vperm.slane %v50, 5
    %v168 = vperm.slane %v51, 5
    %v169 = vmul.f32 %v161, %v165
    %v170 = vmul.f32 %v162, %v166
    %v171 = vmul.f32 %v163, %v167
    %v172 = vmul.f32 %v164, %v168
    %173 = vst [vmem:[#allocation1] ss:$2 sm:$0xff] %v47
    %v174 = vld.sshfl [vmem:[#allocation1 + $0x8] sm:$0xff pattern:$0x75316420]
    %175 = vrot.lane.b32.xlu0 %v174, 1
    %v176 = vpop.permute.xlu0 %175
    %178 = vst [vmem:[#allocation1] ss:$2 sm:$0xff] %v46
    %s179 = scalar_lea.vmem [#allocation1], 16
    %180 = vst [vmem:[%s179] ss:$2 sm:$0xff] %v47
    %v181 = vld.sshfl [vmem:[#allocation1] sm:$0xff pattern:$0x75316420]
    %v182 = vld.sshfl [vmem:[#allocation1 + $0x8] sm:$0xff pattern:$0x75316420]
    %v183 = vld.sshfl [vmem:[#allocation1 + $0x10] sm:$0xff pattern:$0x75316420]
    %v184 = vld.sshfl [vmem:[#allocation1 + $0x18] sm:$0xff pattern:$0x75316420]
    %185 = vrot.lane.b32.xlu0 %v181, 1
    %v186 = vpop.permute.xlu0 %185
    %187 = vrot.lane.b32.xlu0 %v182, 1
    %v188 = vpop.permute.xlu0 %187
    %189 = vrot.lane.b32.xlu0 %v183, 1
    %v190 = vpop.permute.xlu0 %189
    %191 = vrot.lane.b32.xlu0 %v184, 1
    %v192 = vpop.permute.xlu0 %191
    %vm193 = vcmask 7168
    %v194 = vsel %vm193, %v186, %v188
    %v195 = vsel %vm193, %v188, %v190
    %v196 = vsel %vm193, %v190, %v192
    %v201 = vsel %vm193, %v176, %v186
    %v202 = vmul.f32 %v201, %v91
    %v203 = vmul.f32 %v194, %v92
    %v204 = vmul.f32 %v195, %v93
    %v205 = vmul.f32 %v196, %v94
    %206 = vst [vmem:[#allocation1] ss:$2 sm:$0xff] %v46
    %s207 = scalar_lea.vmem [#allocation1], 16
    %208 = vst [vmem:[%s207] ss:$2 sm:$0xff] %v47
    %v209 = vld.sshfl [vmem:[#allocation1] sm:$0xff pattern:$0x75316420]
    %v210 = vld.sshfl [vmem:[#allocation1 + $0x8] sm:$0xff pattern:$0x75316420]
    %v211 = vld.sshfl [vmem:[#allocation1 + $0x10] sm:$0xff pattern:$0x75316420]
    %v212 = vld.sshfl [vmem:[#allocation1 + $0x18] sm:$0xff pattern:$0x75316420]
    %213 = vrot.lane.b32.xlu0 %v209, 127
    %v214 = vpop.permute.xlu0 %213
    %215 = vrot.lane.b32.xlu0 %v210, 127
    %v216 = vpop.permute.xlu0 %215
    %217 = vrot.lane.b32.xlu0 %v211, 127
    %v218 = vpop.permute.xlu0 %217
    %219 = vrot.lane.b32.xlu0 %v212, 127
    %v220 = vpop.permute.xlu0 %219
    %vm221 = vcmask 1039360
    %v222 = vsel %vm221, %v214, %v216
    %v223 = vsel %vm221, %v216, %v218
    %v224 = vsel %vm221, %v218, %v220
    %229 = vst [vmem:[#allocation1] ss:$2 sm:$0xff] %v46
    %v230 = vld.sshfl [vmem:[#allocation1] sm:$0xff pattern:$0x75316420]
    %231 = vrot.lane.b32.xlu0 %v230, 127
    %v232 = vpop.permute.xlu0 %231
    %v234 = vsel %vm221, %v220, %v232
    %v235 = vmul.f32 %v222, %v165
    %v236 = vmul.f32 %v223, %v166
    %v237 = vmul.f32 %v224, %v167
    %v238 = vmul.f32 %v234, %v168
    %239 = vst [vmem:[#allocation1] ss:$2 sm:$0xff] %v46
    %s240 = scalar_lea.vmem [#allocation1], 16
    %241 = vst [vmem:[%s240] ss:$2 sm:$0xff] %v47
    %v242 = vld.sshfl [vmem:[#allocation1] sm:$0xff pattern:$0x75316420]
    %v243 = vld.sshfl [vmem:[#allocation1 + $0x8] sm:$0xff pattern:$0x75316420]
    %v244 = vld.sshfl [vmem:[#allocation1 + $0x10] sm:$0xff pattern:$0x75316420]
    %v245 = vld.sshfl [vmem:[#allocation1 + $0x18] sm:$0xff pattern:$0x75316420]
    %246 = vrot.lane.b32.xlu0 %v242, 113
    %v247 = vpop.permute.xlu0 %246
    %248 = vrot.lane.b32.xlu0 %v243, 113
    %v249 = vpop.permute.xlu0 %248
    %250 = vrot.lane.b32.xlu0 %v244, 113
    %v251 = vpop.permute.xlu0 %250
    %252 = vrot.lane.b32.xlu0 %v245, 113
    %v253 = vpop.permute.xlu0 %252
    %vm254 = vcmask 924672
    %v255 = vsel %vm254, %v247, %v249
    %v256 = vsel %vm254, %v249, %v251
    %v257 = vsel %vm254, %v251, %v253
    %262 = vst [vmem:[#allocation1] ss:$2 sm:$0xff] %v46
    %v263 = vld.sshfl [vmem:[#allocation1] sm:$0xff pattern:$0x75316420]
    %264 = vrot.lane.b32.xlu0 %v263, 113
    %v265 = vpop.permute.xlu0 %264
    %v267 = vsel %vm254, %v253, %v265
    %v268 = vperm.slane %v48, 2
    %v269 = vperm.slane %v49, 2
    %v270 = vperm.slane %v50, 2
    %v271 = vperm.slane %v51, 2
    %v272 = vmul.f32 %v255, %v268
    %v273 = vmul.f32 %v256, %v269
    %v274 = vmul.f32 %v257, %v270
    %v275 = vmul.f32 %v267, %v271
    %v276 = vmul.f32 %v272, %v91
    %v277 = vmul.f32 %v273, %v92
    %v278 = vmul.f32 %v274, %v93
    %v279 = vmul.f32 %v275, %v94
    %280 = vst [vmem:[#allocation1] ss:$2 sm:$0xff] %v46
    %s281 = scalar_lea.vmem [#allocation1], 16
    %282 = vst [vmem:[%s281] ss:$2 sm:$0xff] %v47
    %v283 = vld.sshfl [vmem:[#allocation1] sm:$0xff pattern:$0x75316420]
    %v284 = vld.sshfl [vmem:[#allocation1 + $0x8] sm:$0xff pattern:$0x75316420]
    %v285 = vld.sshfl [vmem:[#allocation1 + $0x10] sm:$0xff pattern:$0x75316420]
    %v286 = vld.sshfl [vmem:[#allocation1 + $0x18] sm:$0xff pattern:$0x75316420]
    %287 = vrot.lane.b32.xlu0 %v283, 112
    %v288 = vpop.permute.xlu0 %287
    %289 = vrot.lane.b32.xlu0 %v284, 112
    %v290 = vpop.permute.xlu0 %289
    %291 = vrot.lane.b32.xlu0 %v285, 112
    %v292 = vpop.permute.xlu0 %291
    %293 = vrot.lane.b32.xlu0 %v286, 112
    %v294 = vpop.permute.xlu0 %293
    %vm295 = vcmask 916480
    %v296 = vsel %vm295, %v288, %v290
    %v297 = vsel %vm295, %v290, %v292
    %v298 = vsel %vm295, %v292, %v294
    %303 = vst [vmem:[#allocation1] ss:$2 sm:$0xff] %v46
    %v304 = vld.sshfl [vmem:[#allocation1] sm:$0xff pattern:$0x75316420]
    %305 = vrot.lane.b32.xlu0 %v304, 112
    %v306 = vpop.permute.xlu0 %305
    %v308 = vsel %vm295, %v294, %v306
    %v309 = vmul.f32 %v296, %v268
    %v310 = vmul.f32 %v297, %v269
    %v311 = vmul.f32 %v298, %v270
    %v312 = vmul.f32 %v308, %v271
    %313 = vst [vmem:[#allocation1] ss:$2 sm:$0xff] %v46
    %s314 = scalar_lea.vmem [#allocation1], 16
    %315 = vst [vmem:[%s314] ss:$2 sm:$0xff] %v47
    %v316 = vld.sshfl [vmem:[#allocation1] sm:$0xff pattern:$0x75316420]
    %v317 = vld.sshfl [vmem:[#allocation1 + $0x8] sm:$0xff pattern:$0x75316420]
    %v318 = vld.sshfl [vmem:[#allocation1 + $0x10] sm:$0xff pattern:$0x75316420]
    %v319 = vld.sshfl [vmem:[#allocation1 + $0x18] sm:$0xff pattern:$0x75316420]
    %320 = vrot.lane.b32.xlu0 %v316, 111
    %v321 = vpop.permute.xlu0 %320
    %322 = vrot.lane.b32.xlu0 %v317, 111
    %v323 = vpop.permute.xlu0 %322
    %324 = vrot.lane.b32.xlu0 %v318, 111
    %v325 = vpop.permute.xlu0 %324
    %326 = vrot.lane.b32.xlu0 %v319, 111
    %v327 = vpop.permute.xlu0 %326
    %vm328 = vcmask 908288
    %v329 = vsel %vm328, %v321, %v323
    %v330 = vsel %vm328, %v323, %v325
    %v331 = vsel %vm328, %v325, %v327
    %336 = vst [vmem:[#allocation1] ss:$2 sm:$0xff] %v46
    %v337 = vld.sshfl [vmem:[#allocation1] sm:$0xff pattern:$0x75316420]
    %338 = vrot.lane.b32.xlu0 %v337, 111
    %v339 = vpop.permute.xlu0 %338
    %v341 = vsel %vm328, %v327, %v339
    %v342 = vmul.f32 %v329, %v268
    %v343 = vmul.f32 %v330, %v269
    %v344 = vmul.f32 %v331, %v270
    %v345 = vmul.f32 %v341, %v271
    %v346 = vmul.f32 %v342, %v165
    %v347 = vmul.f32 %v343, %v166
    %v348 = vmul.f32 %v344, %v167
    %v349 = vmul.f32 %v345, %v168
    %v354 = vrot.slane %v128, 4
    %v355 = vrot.slane %v129, 4
    %v356 = vrot.slane %v130, 4
    %v357 = vrot.slane %v131, 4
    %v366 = vrot.slane %v202, 4
    %v367 = vrot.slane %v203, 4
    %v368 = vrot.slane %v204, 4
    %v369 = vrot.slane %v205, 4
    %374 = vst [vmem:[#allocation1] ss:$2 sm:$0xff] %v46
    %s375 = scalar_lea.vmem [#allocation1], 16
    %376 = vst [vmem:[%s375] ss:$2 sm:$0xff] %v47
    %v377 = vld.sshfl [vmem:[#allocation1] sm:$0xff pattern:$0x75316420]
    %v378 = vld.sshfl [vmem:[#allocation1 + $0x8] sm:$0xff pattern:$0x75316420]
    %v379 = vld.sshfl [vmem:[#allocation1 + $0x10] sm:$0xff pattern:$0x75316420]
    %v380 = vld.sshfl [vmem:[#allocation1 + $0x18] sm:$0xff pattern:$0x75316420]
    %v389 = vrot.slane %v235, 4
    %v390 = vrot.slane %v236, 4
    %v391 = vrot.slane %v237, 4
    %v392 = vrot.slane %v238, 4
    %v401 = vrot.slane %v309, 4
    %v402 = vrot.slane %v310, 4
    %v403 = vrot.slane %v311, 4
    %v404 = vrot.slane %v312, 4
    %vm409 = vcmask 1043456
    %v410 = vsel %vm409, %v95, %v354
    %v411 = vsel %vm409, %v96, %v355
    %v412 = vsel %vm409, %v97, %v356
    %v413 = vsel %vm409, %v98, %v357
    %v414 = vsel %vm409, %v169, %v366
    %v415 = vsel %vm409, %v170, %v367
    %v416 = vsel %vm409, %v171, %v368
    %v417 = vsel %vm409, %v172, %v369
    %v418 = vsel %vm409, %v377, %v389
    %v419 = vsel %vm409, %v378, %v390
    %v420 = vsel %vm409, %v379, %v391
    %v421 = vsel %vm409, %v380, %v392
    %v422 = vsel %vm409, %v276, %v401
    %v423 = vsel %vm409, %v277, %v402
    %v424 = vsel %vm409, %v278, %v403
    %v425 = vsel %vm409, %v279, %v404
    %v426 = vld [vmem:[%s1] sm:$0xff]
    %v427 = vld [vmem:[%s3] sm:$0xff]
    %429 = vset.pattern.permute.xlu0 0
    %430 = vperm.xlu0 %429, %v427
    %v431 = vpop.permute.xlu0 %430
    %vm433 = vcmask 293888
    %v435 = vsel %vm433, %v426, 0
    %v438 = vsel %vm409, %v346, 0
    %v441 = vsel %vm409, %v347, 0
    %v444 = vsel %vm409, %v348, 0
    %v447 = vsel %vm409, %v349, 0
    %449 = vmatpush.msra.mxu0 0.0
    %450 = vmatpush.msra.mxu0 0.0
    %451 = vmatpush.msra.mxu0 0.0
    %452 = vmatpush.msra.mxu0 0.0
    %453 = vmatpush.msra.mxu0 0.0
    %454 = vmatpush.msra.mxu0 0.0
    %455 = vmatpush.msra.mxu0 0.0
    %456 = vmatpush.msra.mxu0 0.0
    %457 = vmatpush.msra.mxu0 0.0
    %458 = vmatpush.msra.mxu0 0.0
    %459 = vmatpush.msra.mxu0 0.0
    %460 = vmatpush.msra.mxu0 %v438
    %461 = vmatpush.msra.mxu0 %v422
    %462 = vmatpush.msra.mxu0 %v418
    %463 = vmatpush.msra.mxu0 %v414
    %464 = vmatpush.msra.mxu0 %v410
    %465 = vmatmul.f32.gmra.mxu0 %v435
    %v466 = vpop.f32.mrf.mxu0
    %v467 = vadd.f32 %v431, %v466
    %468 = vdwg.mxu0
    %469 = vmatpush.msra.mxu0 0.0
    %470 = vmatpush.msra.mxu0 0.0
    %471 = vmatpush.msra.mxu0 0.0
    %472 = vmatpush.msra.mxu0 0.0
    %473 = vmatpush.msra.mxu0 0.0
    %474 = vmatpush.msra.mxu0 0.0
    %475 = vmatpush.msra.mxu0 0.0
    %476 = vmatpush.msra.mxu0 0.0
    %477 = vmatpush.msra.mxu0 0.0
    %478 = vmatpush.msra.mxu0 0.0
    %479 = vmatpush.msra.mxu0 0.0
    %480 = vmatpush.msra.mxu0 %v441
    %481 = vmatpush.msra.mxu0 %v423
    %482 = vmatpush.msra.mxu0 %v419
    %483 = vmatpush.msra.mxu0 %v415
    %484 = vmatpush.msra.mxu0 %v411
    %485 = vmatmul.f32.gmra.mxu0 %v435
    %v486 = vpop.f32.mrf.mxu0
    %v487 = vadd.f32 %v431, %v486
    %488 = vdwg.mxu0
    %489 = vmatpush.msra.mxu0 0.0
    %490 = vmatpush.msra.mxu0 0.0
    %491 = vmatpush.msra.mxu0 0.0
    %492 = vmatpush.msra.mxu0 0.0
    %493 = vmatpush.msra.mxu0 0.0
    %494 = vmatpush.msra.mxu0 0.0
    %495 = vmatpush.msra.mxu0 0.0
    %496 = vmatpush.msra.mxu0 0.0
    %497 = vmatpush.msra.mxu0 0.0
    %498 = vmatpush.msra.mxu0 0.0
    %499 = vmatpush.msra.mxu0 0.0
    %500 = vmatpush.msra.mxu0 %v444
    %501 = vmatpush.msra.mxu0 %v424
    %502 = vmatpush.msra.mxu0 %v420
    %503 = vmatpush.msra.mxu0 %v416
    %504 = vmatpush.msra.mxu0 %v412
    %505 = vmatmul.f32.gmra.mxu0 %v435
    %v506 = vpop.f32.mrf.mxu0
    %v507 = vadd.f32 %v431, %v506
    %508 = vdwg.mxu0
    %509 = vmatpush.msra.mxu0 0.0
    %510 = vmatpush.msra.mxu0 0.0
    %511 = vmatpush.msra.mxu0 0.0
    %512 = vmatpush.msra.mxu0 0.0
    %513 = vmatpush.msra.mxu0 0.0
    %514 = vmatpush.msra.mxu0 0.0
    %515 = vmatpush.msra.mxu0 0.0
    %516 = vmatpush.msra.mxu0 0.0
    %517 = vmatpush.msra.mxu0 0.0
    %518 = vmatpush.msra.mxu0 0.0
    %519 = vmatpush.msra.mxu0 0.0
    %520 = vmatpush.msra.mxu0 %v447
    %521 = vmatpush.msra.mxu0 %v425
    %522 = vmatpush.msra.mxu0 %v421
    %523 = vmatpush.msra.mxu0 %v417
    %524 = vmatpush.msra.mxu0 %v413
    %525 = vmatmul.f32.gmra.mxu0 %v435
    %v526 = vpop.f32.mrf.mxu0
    %v527 = vadd.f32 %v431, %v526
    %528 = vdwg.mxu0
    %v529 = vmax.f32 %v467, 0.0
    %v530 = vmax.f32 %v487, 0.0
    %v531 = vmax.f32 %v507, 0.0
    %v532 = vmax.f32 %v527, 0.0
    %533 = vst [vmem:[#allocation7] sm:$0xff] %v529
    %534 = vst [vmem:[#allocation7 + $0x8] sm:$0xff] %v530
    %535 = vst [vmem:[#allocation7 + $0x10] sm:$0xff] %v531
    %536 = vst [vmem:[#allocation7 + $0x18] sm:$0xff] %v532
    // Predicated region
    $region26: #{tpu_custom_call.1} parent=1 // pred_check
      _
    $region27: #{tpu_custom_call.1} parent=1 // pred_check_branch
      %538 = sbr.rel (0) target = $region29
    $region28: #{tpu_custom_call.1} parent=1 // pred_region
      %540 = vsyncadd [#allocation4], 0
      %s542 = sshll.u32 [#allocation7], 4
      %s543 = int_to_ptr.vmem [resolvable:$true] %s542
      %s544 = sshll.u32 %s4, 4
      %s545 = int_to_ptr.hbm [resolvable:$true] %s544
      %547 = dma.vmem_to_hbm [thread:$0]  %s543, 512, %s545, [#allocation4]
    $region29: #{tpu_custom_call.1} parent=1 // pred_fallthru
      _
    // Predicated region
    $region30: #{tpu_custom_call.1} parent=1 // pred_check
      _
    $region31: #{tpu_custom_call.1} parent=1 // pred_check_branch
      %549 = sbr.rel (0) target = $region33
    $region32: #{tpu_custom_call.1} parent=1 // pred_region
      %551 = dma.done [#allocation4], 512
    $region33: #{tpu_custom_call.1} parent=1 // pred_fallthru
      _
    %552 = vsyncpa [#allocation3], 1
    %553 = vsyncpa [#allocation6], 1
    %554 = vsyncpa [#allocation4], 1

</llo_original>
